<compile_context>
chip_gen: v7x
topology: tpu7x:2x2x1
jax: 0.10.0
libtpu: 0.0.40
codegen_flags: <defaults>
</compile_context>

<pallas_src>
import jax
import jax.numpy as jnp
from jax.experimental import pallas as pl
from jax.experimental.pallas import tpu as pltpu


_LANE = 128
_MAX_LANE_TILE = 16384        # per perf review: 8K-16K lanes per tile
_MIN_PALLAS_BYTES = 1 << 20   # below ~1 MiB of activations, XLA's fused conv wins


def _vmem_capacity_bytes():
    """Physical VMEM capacity, with a device-kind keyed fallback."""
    try:
        return int(pltpu.get_tpu_info().vmem_capacity_bytes)
    except Exception:
        pass
    try:
        kind = (jax.devices()[0].device_kind or "").lower()
    except Exception:
        kind = ""
    if "v7" in kind or "7x" in kind:
        return 64 * 2**20
    return 128 * 2**20


def _tensorcores_per_chip():
    """2 on v7x-like chips, 1 otherwise (heuristic, failure-safe)."""
    try:
        kind = (jax.devices()[0].device_kind or "").lower()
    except Exception:
        return 1
    return 2 if ("v7" in kind or "7x" in kind) else 1


def _pick_lane_tile(hw, c_in, c_out, in_isize, out_isize, budget):
    """Largest multiple-of-128 lane tile (<= hw, <= cap) that fits the budget.

    Budget terms: double-buffered input tile, double-buffered output chunk
    tiles, the per-chunk f32 accumulator, plus (2x-buffered) f32 weight+bias.
    """
    hw_floor = (hw // _LANE) * _LANE                    # keep block dim <= array dim
    per_lane = 2 * c_in * in_isize + 2 * c_out * out_isize + c_out * 4
    fixed = 2 * (c_out * c_in + c_out) * 4
    avail = max(budget - fixed, 1 << 20)
    t = (avail // per_lane) // _LANE * _LANE
    return max(_LANE, min(t, _MAX_LANE_TILE, hw_floor))


def _make_conv1x1_split_kernel(split_sizes):
    k = len(split_sizes)

    def kernel(*refs):
        x_ref = refs[0]
        w_refs = refs[1:1 + k]
        b_refs = refs[1 + k:1 + 2 * k]
        out_refs = refs[1 + 2 * k:1 + 3 * k]
        x = x_ref[0]                                    # [C_in, thw], lane = spatial
        for i in range(k):
            # One tiny MXU dot per split chunk; f32 accumulation + f32 bias.
            acc = jnp.dot(w_refs[i][...], x, preferred_element_type=jnp.float32)
            acc = acc + b_refs[i][...]                  # [c_i, thw] + [c_i, 1]
            out_refs[i][...] = acc[None].astype(out_refs[i].dtype)

    return kernel


def _conv1x1_split_xla(x, w, b, split, out_dtype):
    """Plain-XLA path for tiny levels: Pallas launch overhead is pure loss there."""
    y = (jnp.einsum('nchw,oc->nohw', x.astype(jnp.float32), w.astype(jnp.float32))
         + b.astype(jnp.float32)[None, :, None, None]).astype(out_dtype)
    chunks, off = [], 0
    for c in split:
        chunks.append(y[:, off:off + c])
        off += c
    return chunks


def conv1x1_split_pallas(x, w, b, split, *, out_dtype=None,
                         min_pallas_bytes=_MIN_PALLAS_BYTES):
    """Fused 1x1 conv (NCHW) + channel split.

    x: [N, C_in, H, W]; w: [C_out, C_in]; b: [C_out]; split: chunk sizes summing
    to C_out.  Returns a list of [N, c, H, W] chunks (== Conv2d(x).split(split, 1)).
    """
    n, c_in, h, wdim = x.shape
    hw = h * wdim
    out_dtype = x.dtype if out_dtype is None else jnp.dtype(out_dtype)

    nz = [(i, c) for i, c in enumerate(split) if c > 0]
    nz_split = [c for _, c in nz]
    c_out_nz = sum(nz_split)

    act_bytes = n * c_in * hw * x.dtype.itemsize
    if hw < _LANE or act_bytes < min_pallas_bytes or not nz_split:
        return _conv1x1_split_xla(x, w, b, split, out_dtype)

    x3 = x.reshape(n, c_in, hw)                         # contiguous reshape: free

    # Per-chunk weights (cast once to the activation dtype) and f32 bias columns.
    w_chunks, b_chunks = [], []
    off = 0
    for c in split:
        if c > 0:
            w_chunks.append(w[off:off + c].astype(x.dtype))
            b_chunks.append(b[off:off + c].astype(jnp.float32).reshape(c, 1))
        off += c

    cap = _vmem_capacity_bytes()
    vmem_limit = int(min(cap * 3 // 4, 96 * 2**20))     # never the full physical VMEM
    budget = vmem_limit // 2
    thw = _pick_lane_tile(hw, c_in, c_out_nz, x.dtype.itemsize,
                          out_dtype.itemsize, budget)

    # Keep both v7x TensorCores busy when the batch axis alone cannot.
    desired_steps = 4 if _tensorcores_per_chip() >= 2 else 1
    j_needed = -(-desired_steps // n)
    if j_needed > 1:
        cap_j = max(_LANE, (hw // j_needed) // _LANE * _LANE)
        thw = min(thw, cap_j)

    grid = (n, pl.cdiv(hw, thw))                        # both axes fully parallel

    outs = pl.pallas_call(
        _make_conv1x1_split_kernel(tuple(nz_split)),
        out_shape=tuple(jax.ShapeDtypeStruct((n, c, hw), out_dtype)
                        for c in nz_split),
        grid_spec=pltpu.PrefetchScalarGridSpec(
            num_scalar_prefetch=0,
            grid=grid,
            in_specs=(
                [pl.BlockSpec((1, c_in, thw), lambda i, j: (i, 0, j))]   # activations
                + [pl.BlockSpec((c, c_in), lambda i, j: (0, 0))          # chunk weights
                   for c in nz_split]
                + [pl.BlockSpec((c, 1), lambda i, j: (0, 0))             # chunk biases
                   for c in nz_split]
            ),
            out_specs=tuple(pl.BlockSpec((1, c, thw), lambda i, j: (i, 0, j))
                            for c in nz_split),
        ),
        compiler_params=pltpu.CompilerParams(
            dimension_semantics=("parallel", "parallel"),
            vmem_limit_bytes=vmem_limit,
        ),
    )(x3, *w_chunks, *b_chunks)
    if not isinstance(outs, (list, tuple)):
        outs = (outs,)

    chunks = [jnp.zeros((n, 0, h, wdim), out_dtype) for _ in split]
    for (idx, c), y in zip(nz, outs):
        chunks[idx] = y.reshape(n, c, h, wdim)          # contiguous reshape: free
    return chunks


class DHLC:
    """JAX/Pallas port of cbnet.connection.DHLC (forward semantics preserved)."""

    def __init__(self, in_channels, out_channels, key, zero_init=True,
                 out_dtype=None, min_pallas_bytes=_MIN_PALLAS_BYTES):
        assert len(in_channels) <= len(out_channels)
        m = len(out_channels)
        n = len(in_channels)
        self.out_channels = list(out_channels)
        self.split_sizes = [out_channels[:i + 1 + m - n] for i in range(n)]
        self.out_dtype = out_dtype
        self.min_pallas_bytes = min_pallas_bytes
        self.params = []  # per level: (W [C_out, C_in], b [C_out]) or None
        for i, in_c in enumerate(in_channels):
            out_c = sum(self.split_sizes[i])
            if in_c and out_c:
                if zero_init:
                    # matches constant_init(module, 0) in the PyTorch module
                    w = jnp.zeros((out_c, in_c), jnp.float32)
                    b = jnp.zeros((out_c,), jnp.float32)
                else:
                    # TODO(synk): nn.Conv2d's default kaiming-uniform init is not
                    # reproduced exactly; a scaled normal init is used instead.
                    key, kw, kb = jax.random.split(key, 3)
                    w = 0.05 * jax.random.normal(kw, (out_c, in_c), jnp.float32)
                    b = 0.05 * jax.random.normal(kb, (out_c,), jnp.float32)
                self.params.append((w, b))
            else:
                self.params.append(None)

    def __call__(self, feats):
        assert len(feats) == len(self.params) <= len(self.out_channels)
        outs = []
        for p, x, sz in zip(self.params, feats, self.split_sizes):
            if p is None:
                outs.append([[] for _ in sz])
                continue
            w, b = p
            outs.append(conv1x1_split_pallas(
                x, w, b, sz, out_dtype=self.out_dtype,
                min_pallas_bytes=self.min_pallas_bytes))

        cb_feats = []
        for i in range(len(self.out_channels)):
            feeds = [ys[i] for ys in outs[i:]
                     if (not isinstance(ys[i], list)) and ys[i].shape[1]]
            cb_feats.append(feeds)
        return cb_feats


def _reference_cb_feats(dhlc, feats):
    """Pure-JAX reference (f32, no Pallas) for correctness checking."""
    outs = []
    for p, x, sz in zip(dhlc.params, feats, dhlc.split_sizes):
        if p is None:
            outs.append([[] for _ in sz])
            continue
        w, b = p
        y = (jnp.einsum('nchw,oc->nohw', x.astype(jnp.float32), w)
             + b[None, :, None, None])
        chunks, off = [], 0
        for c in sz:
            chunks.append(y[:, off:off + c])
            off += c
        outs.append(chunks)
    cb_feats = []
    for i in range(len(dhlc.out_channels)):
        feeds = [ys[i] for ys in outs[i:]
                 if (not isinstance(ys[i], list)) and ys[i].shape[1]]
        cb_feats.append(feeds)
    return cb_feats


if __name__ == "__main__":
    key = jax.random.PRNGKey(0)
    in_channels = [4, 8, 16]
    out_channels = [4, 8, 16]

    # Deterministic inputs: a 3-level FPN-like pyramid, NCHW.
    #  level 0: H*W = 1024 (aligned)        -> Pallas, single full-spatial tile
    #  level 1: H*W = 324  (not 128-aligned)-> Pallas, partial last block (clipped store)
    #  level 2: H*W = 64   (< 128 lanes)    -> documented XLA fallback
    key, k0, k1, k2, kp = jax.random.split(key, 5)
    feats = [
        jax.random.normal(k0, (2, 4, 32, 32), jnp.float32),
        jax.random.normal(k1, (2, 8, 18, 18), jnp.float32),
        jax.random.normal(k2, (2, 16, 8, 8), jnp.float32),
    ]

    # zero_init=False so the matmul kernel produces non-trivial values.
    # min_pallas_bytes=0 forces the Pallas path at these deliberately small demo
    # shapes; the production default (~1 MiB) would route them to the XLA path.
    dhlc = DHLC(in_channels, out_channels, key=kp, zero_init=False,
                min_pallas_bytes=0)
    cb_feats = dhlc(feats)
    jax.block_until_ready(jax.tree_util.tree_leaves(cb_feats))

    # Validate against a pure-JAX reference of the same forward pass.
    ref = _reference_cb_feats(dhlc, feats)
    for got_list, ref_list in zip(cb_feats, ref):
        assert len(got_list) == len(ref_list)
        for g, r in zip(got_list, ref_list):
            assert g.shape == r.shape, (g.shape, r.shape)
            assert jnp.allclose(g, r, atol=1e-5, rtol=1e-5)

    # bf16 activations + bf16 outputs (the DMA-byte-saving path): same params,
    # looser tolerance against the f32 reference.
    feats_bf16 = [f.astype(jnp.bfloat16) for f in feats]
    dhlc_bf16 = DHLC(in_channels, out_channels, key=kp, zero_init=False,
                     out_dtype=jnp.bfloat16, min_pallas_bytes=0)
    cb_bf16 = dhlc_bf16(feats_bf16)
    jax.block_until_ready(jax.tree_util.tree_leaves(cb_bf16))
    for got_list, ref_list in zip(cb_bf16, ref):
        for g, r in zip(got_list, ref_list):
            assert g.shape == r.shape
            assert jnp.allclose(g.astype(jnp.float32), r, atol=5e-2, rtol=5e-2)

    # Sanity-check the module's default zero-init path too (all outputs must be 0).
    dhlc_zero = DHLC(in_channels, out_channels, key=kp, zero_init=True,
                     min_pallas_bytes=0)
    cb_zero = dhlc_zero(feats)
    jax.block_until_ready(jax.tree_util.tree_leaves(cb_zero))
    for lst in cb_zero:
        for t in lst:
            assert jnp.allclose(t, 0.0)

    print("KERNEL_OK")
</pallas_src>

<mosaic_0001>
module attributes {stable_mosaic.version = 11 : i64} {
  func.func @kernel(%arg0: i32, %arg1: i32, %arg2: memref<1x4x1024xf32, #tpu.memory_space<vmem>>, %arg3: memref<4x4xf32, #tpu.memory_space<vmem>>, %arg4: memref<4x1xf32, #tpu.memory_space<vmem>>, %arg5: memref<1x4x1024xf32, #tpu.memory_space<vmem>>) attributes {dimension_semantics = [#tpu.dimension_semantics<parallel>, #tpu.dimension_semantics<parallel>], iteration_bounds = array<i64: 2, 1>, scalar_prefetch = 0 : i64, scratch_operands = 0 : i64, tpu.core_type = #tpu.core_type<tc>, window_params = [{transform_indices = @transform_0, window_bounds = array<i64: 1, 4, 1024>}, {pipeline_mode = #tpu.pipeline_mode<synchronous>, transform_indices = @transform_1, window_bounds = array<i64: 4, 4>}, {pipeline_mode = #tpu.pipeline_mode<synchronous>, transform_indices = @transform_2, window_bounds = array<i64: 4, 1>}, {transform_indices = @transform_3, window_bounds = array<i64: 1, 4, 1024>}]} {
    %c0 = arith.constant 0 : index
    %c0_0 = arith.constant 0 : index
    %c0_1 = arith.constant 0 : index
    %0 = vector.load %arg2[%c0, %c0_0, %c0_1] : memref<1x4x1024xf32, #tpu.memory_space<vmem>>, vector<1x4x1024xf32>
    %1 = vector.shape_cast %0 : vector<1x4x1024xf32> to vector<4x1024xf32>
    %c0_2 = arith.constant 0 : index
    %c0_3 = arith.constant 0 : index
    %2 = vector.load %arg3[%c0_2, %c0_3] : memref<4x4xf32, #tpu.memory_space<vmem>>, vector<4x4xf32>
    %cst = arith.constant dense<0.000000e+00> : vector<4x1024xf32>
    %3 = tpu.matmul %2, %1, %cst {dimension_numbers = #tpu.dot_dimension_numbers<[1], [0], [0], [1], [0, 0, 1, 1], [], []>} : vector<4x4xf32>, vector<4x1024xf32>, vector<4x1024xf32> -> vector<4x1024xf32>
    %c0_4 = arith.constant 0 : index
    %c0_5 = arith.constant 0 : index
    %4 = vector.load %arg4[%c0_4, %c0_5] : memref<4x1xf32, #tpu.memory_space<vmem>>, vector<4x1xf32>
    %5 = vector.broadcast %4 : vector<4x1xf32> to vector<4x1024xf32>
    %6 = arith.addf %3, %5 : vector<4x1024xf32>
    %7 = vector.shape_cast %6 : vector<4x1024xf32> to vector<1x4x1024xf32>
    %c0_6 = arith.constant 0 : index
    %c0_7 = arith.constant 0 : index
    %c0_8 = arith.constant 0 : index
    %8 = vector.load %arg5[%c0_6, %c0_7, %c0_8] : memref<1x4x1024xf32, #tpu.memory_space<vmem>>, vector<1x4x1024xf32>
    tpu.vector_store %arg5[%c0_6, %c0_7, %c0_8], %7 {strides = array<i32>} : memref<1x4x1024xf32, #tpu.memory_space<vmem>>, vector<1x4x1024xf32>,
    return
  }
  func.func @transform_0(%arg0: i32, %arg1: i32) -> (i32, i32, i32) {
    %c0_i32 = arith.constant 0 : i32
    %c0_i32_0 = arith.constant 0 : i32
    return %arg0, %c0_i32, %arg1 : i32, i32, i32
  }
  func.func @transform_1(%arg0: i32, %arg1: i32) -> (i32, i32) {
    %c0_i32 = arith.constant 0 : i32
    %c0_i32_0 = arith.constant 0 : i32
    %c0_i32_1 = arith.constant 0 : i32
    return %c0_i32, %c0_i32_0 : i32, i32
  }
  func.func @transform_2(%arg0: i32, %arg1: i32) -> (i32, i32) {
    %c0_i32 = arith.constant 0 : i32
    %c0_i32_0 = arith.constant 0 : i32
    %c0_i32_1 = arith.constant 0 : i32
    return %c0_i32, %c0_i32_0 : i32, i32
  }
  func.func @transform_3(%arg0: i32, %arg1: i32) -> (i32, i32, i32) {
    %c0_i32 = arith.constant 0 : i32
    %c0_i32_0 = arith.constant 0 : i32
    return %arg0, %c0_i32, %arg1 : i32, i32, i32
  }
}

</mosaic_0001>

<llo_original>
// kernel: tpu_custom_call.1
$region0: #{tpu_custom_call.1}
  #allocation0 [shape = 'u32[]', space=smem, size = 0x4, offset = 0x4, fixed_abs, tag = 'smem constant byte address 0x4 - core index']
  #allocation1 [shape = 'u32[144,128]{1,0:T(1,128)}', space=vmem, size = 0x12000, scoped, tag = 'internal scratch']
  %s0 = inlined_call_operand.hbm [shape: f32[2,4,1024], index: 0, kind: input, shape index: {}]
  %s1 = inlined_call_operand.hbm [shape: f32[4,4], index: 1, kind: input, shape index: {}]
  %s2 = inlined_call_operand.hbm [shape: f32[4,1], index: 2, kind: input, shape index: {}]
  %s3 = inlined_call_operand.hbm [shape: f32[2,4,1024], index: 3, kind: output, shape index: {}]
  %s4 = sld [smem:[#allocation0]]
  $region57: #{tpu_custom_call.1} parent=0
    _
  %s6 = ssub.s32 1, %s4
  %s7 = scalar_select 0, %s6, %s4
  $region1: #{tpu_custom_call.1} parent=0
    #allocation2 [shape = 'u8[32768]{0}', space=vmem, size = 0x8000, scoped, tag = 'input window, operand 0']
    #allocation3 [shape = 's32[2]{0}', space=sflag, size = 0x8, scoped, tag = 'scoped memory for tpu_custom_call.1']
    #allocation4 [shape = 's32[2]{0}', space=sflag, size = 0x8, scoped, tag = 'scoped memory for tpu_custom_call.1']
    #allocation5 [shape = 'u8[2048]{0}', space=vmem, size = 0x800, scoped, tag = 'input window, operand 1, single buffered']
    #allocation6 [shape = 's32[1]{0}', space=sflag, size = 0x4, scoped, tag = 'scoped memory for tpu_custom_call.1']
    #allocation7 [shape = 'u8[2048]{0}', space=vmem, size = 0x800, scoped, tag = 'input window, operand 2, single buffered']
    #allocation8 [shape = 'u8[32768]{0}', space=vmem, size = 0x8000, scoped, tag = 'output window, operand 0']
    %8 = vsyncpa [#allocation3], 0
    %s9 = scalar_lea.sflag [#allocation3], 1
    %10 = vsyncpa %s9, 0
    %11 = vsyncpa [#allocation6], 0
    %12 = vsyncpa [#allocation4], 0
    %s13 = scalar_lea.sflag [#allocation4], 1
    %14 = vsyncpa %s13, 0
    loop: start=0, step=1, limit=4
    $region2: #{tpu_custom_call.1} parent=1 // loop_pre_header
      _
    $region3: #{tpu_custom_call.1} parent=1 // loop_header
      %s16 = sphi 0, %s20
      %p17 = scmp.ge.s32.totalorder %s16, 4
      %s23 = sphi 0, %s35
      %s24 = sphi 0, %s31
      %s25 = sphi 0, %s23
      %s26 = sphi 0, %s24
      %s27 = sphi 0, %s25
      %s28 = sphi 0, %s26
      %s40 = sphi 0, %s42
      %s43 = sphi 0, %s40
      %s44 = sphi 0, %s43
      %s60 = sphi 0, %s44
      %s64 = sphi 0, %s64
      %s66 = sphi 0, %s64
      %s67 = sphi 0, %s66
      %s81 = sphi 0, %s67
      %s85 = sphi 0, %s85
      %s87 = sphi 0, %s85
      %s88 = sphi 0, %s87
      %s102 = sphi 0, %s88
      %s110 = sphi 0, %s112
      %s113 = sphi 0, %s110
      %s114 = sphi 0, %s113
      %s130 = sphi 0, %s114
    $region4: #{tpu_custom_call.1} parent=1 // loop_header_branch
      %19 = sbr.rel (%p17) target = $region8
    $region5: #{tpu_custom_call.1} parent=1 // loop_body
      %s21 = ssub.s32 %s16, 1
      %s22 = ssub.s32 %s16, 2
      %s29 = sadd.s32 1, %s24
      %p30 = scmp.ge.s32.totalorder %s29, 1
      %s31 = scalar_select %p30, 0, %s29
      %s32 = sadd.s32 1, %s23
      %s33 = scalar_select %p30, %s32, %s23
      %p34 = scmp.ge.s32.totalorder %s33, 2
      %s35 = scalar_select %p34, 0, %s33
      %s36 = ssub.s32 %s23, %s35
      %s37 = ssub.s32 %s24, %s31
      %s38 = sor.u32 %s36, %s37
      %p39 = scmp.eq.s32.totalorder %s38, 0
      %s41 = sadd.s32 %s40, 1
      %s42 = scalar_select %p39, %s40, %s41
      %p45 = pneg %p39
      %p46 = scmp.eq.s32.totalorder %s16, 1
      %p47 = por %p45, %p46
      %p48 = scmp.ne.s32.totalorder %s40, %s43
      %p49 = scmp.eq.s32.totalorder %s16, 0
      %p50 = por %p48, %p49
      %p51 = scmp.ne.s32.totalorder %s40, %s43
      %p52 = scmp.eq.s32.totalorder %s21, 1
      %p53 = por %p51, %p52
      %p54 = scmp.ne.s32.totalorder %s43, %s44
      %p55 = scmp.eq.s32.totalorder %s21, 0
      %p56 = por %p54, %p55
      %p57 = scmp.ne.s32.totalorder %s43, %s44
      %p58 = scmp.eq.s32.totalorder %s22, 1
      %p59 = por %p57, %p58
      %p61 = scmp.ne.s32.totalorder %s44, %s60
      %p62 = scmp.eq.s32.totalorder %s22, 0
      %p63 = por %p61, %p62
      %s65 = sadd.s32 %s64, 1
      %p68 = scmp.eq.s32.totalorder %s16, 1
      %p69 = scmp.ne.s32.totalorder %s64, %s66
      %p70 = scmp.eq.s32.totalorder %s16, 0
      %p71 = por %p69, %p70
      %p72 = scmp.ne.s32.totalorder %s64, %s66
      %p73 = scmp.eq.s32.totalorder %s21, 1
      %p74 = por %p72, %p73
      %p75 = scmp.ne.s32.totalorder %s66, %s67
      %p76 = scmp.eq.s32.totalorder %s21, 0
      %p77 = por %p75, %p76
      %p78 = scmp.ne.s32.totalorder %s66, %s67
      %p79 = scmp.eq.s32.totalorder %s22, 1
      %p80 = por %p78, %p79
      %p82 = scmp.ne.s32.totalorder %s67, %s81
      %p83 = scmp.eq.s32.totalorder %s22, 0
      %p84 = por %p82, %p83
      %s86 = sadd.s32 %s85, 1
      %p89 = scmp.eq.s32.totalorder %s16, 1
      %p90 = scmp.ne.s32.totalorder %s85, %s87
      %p91 = scmp.eq.s32.totalorder %s16, 0
      %p92 = por %p90, %p91
      %p93 = scmp.ne.s32.totalorder %s85, %s87
      %p94 = scmp.eq.s32.totalorder %s21, 1
      %p95 = por %p93, %p94
      %p96 = scmp.ne.s32.totalorder %s87, %s88
      %p97 = scmp.eq.s32.totalorder %s21, 0
      %p98 = por %p96, %p97
      %p99 = scmp.ne.s32.totalorder %s87, %s88
      %p100 = scmp.eq.s32.totalorder %s22, 1
      %p101 = por %p99, %p100
      %p103 = scmp.ne.s32.totalorder %s88, %s102
      %p104 = scmp.eq.s32.totalorder %s22, 0
      %p105 = por %p103, %p104
      %s106 = ssub.s32 %s23, %s35
      %s107 = ssub.s32 %s24, %s31
      %s108 = sor.u32 %s106, %s107
      %p109 = scmp.eq.s32.totalorder %s108, 0
      %s111 = sadd.s32 %s110, 1
      %s112 = scalar_select %p109, %s110, %s111
      %p115 = pneg %p109
      %p116 = scmp.eq.s32.totalorder %s16, 1
      %p117 = por %p115, %p116
      %p118 = scmp.ne.s32.totalorder %s110, %s113
      %p119 = scmp.eq.s32.totalorder %s16, 0
      %p120 = por %p118, %p119
      %p121 = scmp.ne.s32.totalorder %s110, %s113
      %p122 = scmp.eq.s32.totalorder %s21, 1
      %p123 = por %p121, %p122
      %p124 = scmp.ne.s32.totalorder %s113, %s114
      %p125 = scmp.eq.s32.totalorder %s21, 0
      %p126 = por %p124, %p125
      %p127 = scmp.ne.s32.totalorder %s113, %s114
      %p128 = scmp.eq.s32.totalorder %s22, 1
      %p129 = por %p127, %p128
      %p131 = scmp.ne.s32.totalorder %s114, %s130
      %p132 = scmp.eq.s32.totalorder %s22, 0
      %p133 = por %p131, %p132
      %p134 = scmp.le.s32.totalorder 1, %s16
      %p135 = scmp.lt.s32.totalorder %s16, 3
      %p136 = pnand %p134, %p135
      %p137 = pneg %p136
      // Predicated region
      $region9: #{tpu_custom_call.1} parent=5 // pred_check
        _
      $region10: #{tpu_custom_call.1} parent=5 // pred_check_branch
        %139 = sbr.rel (%p136) target = $region12
      $region11: #{tpu_custom_call.1} parent=5 // pred_region
        %s140 = ssub.s32 %s16, 1
        // Predicated region
        $region13: #{tpu_custom_call.1} parent=11 // pred_check
          %p141 = pneg %p77
        $region14: #{tpu_custom_call.1} parent=11 // pred_check_branch
          %143 = sbr.rel (%p141) target = $region16
        $region15: #{tpu_custom_call.1} parent=11 // pred_region
          %s145 = ssub.s32 64, 64
          %146 = vsyncadd [#allocation6], %s145
          %s148 = sshll.u32 [#allocation5], 4
          %s149 = int_to_ptr.vmem [resolvable:$true] %s148
          %151 = dma.hbm_to_vmem [thread:$0]  %s1, 64, %s149, [#allocation6]
        $region16: #{tpu_custom_call.1} parent=11 // pred_fallthru
          _
        // Predicated region
        $region17: #{tpu_custom_call.1} parent=11 // pred_check
          %p152 = pneg %p98
        $region18: #{tpu_custom_call.1} parent=11 // pred_check_branch
          %154 = sbr.rel (%p152) target = $region20
        $region19: #{tpu_custom_call.1} parent=11 // pred_region
          %s156 = ssub.s32 64, 64
          %157 = vsyncadd [#allocation6], %s156
          %s159 = sshll.u32 [#allocation7], 4
          %s160 = int_to_ptr.vmem [resolvable:$true] %s159
          %162 = dma.hbm_to_vmem [thread:$0]  %s2, 64, %s160, [#allocation6]
        $region20: #{tpu_custom_call.1} parent=11 // pred_fallthru
          _
      $region12: #{tpu_custom_call.1} parent=5 // pred_fallthru
        _
      %p163 = scmp.lt.s32.totalorder %s16, 2
      // Predicated region
      $region21: #{tpu_custom_call.1} parent=5 // pred_check
        %p164 = pneg %p163
      $region22: #{tpu_custom_call.1} parent=5 // pred_check_branch
        %166 = sbr.rel (%p164) target = $region24
      $region23: #{tpu_custom_call.1} parent=5 // pred_region
        // Predicated region
        $region25: #{tpu_custom_call.1} parent=23 // pred_check
          %p167 = pneg %p50
        $region26: #{tpu_custom_call.1} parent=23 // pred_check_branch
          %169 = sbr.rel (%p167) target = $region28
        $region27: #{tpu_custom_call.1} parent=23 // pred_region
          %s170 = sand.u32 %s40, 1
          %s171 = scalar_lea.sflag [#allocation3], %s170
          %s172 = sand.u32 %s40, 1
          %s173 = smul.addr %s172, 32
          %s174 = scalar_lea.vmem [#allocation2], %s173
          %s175 = smul.u32 8, %s24
          %s177 = ssub.s32 512, 512
          %178 = vsyncadd %s171, %s177
          %s179 = smul.addr %s23, 8
          %s180 = sadd.s32 %s175, %s179
          %s181 = smul.addr %s180, 64
          %s182 = scalar_lea.hbm %s0, %s181
          %s184 = sshll.u32 %s174, 4
          %s185 = int_to_ptr.vmem [resolvable:$true] %s184
          %187 = dma.hbm_to_vmem [thread:$0]  %s182, 512, %s185, %s171
        $region28: #{tpu_custom_call.1} parent=23 // pred_fallthru
          _
      $region24: #{tpu_custom_call.1} parent=5 // pred_fallthru
        _
      %p188 = scmp.le.s32.totalorder 1, %s16
      %p189 = scmp.lt.s32.totalorder %s16, 3
      %p190 = pnand %p188, %p189
      %p191 = pneg %p190
      // Predicated region
      $region29: #{tpu_custom_call.1} parent=5 // pred_check
        _
      $region30: #{tpu_custom_call.1} parent=5 // pred_check_branch
        %193 = sbr.rel (%p190) target = $region32
      $region31: #{tpu_custom_call.1} parent=5 // pred_region
        %s194 = ssub.s32 %s16, 1
        %s195 = sand.u32 %s43, 1
        %s196 = scalar_lea.sflag [#allocation3], %s195
        %s197 = sand.u32 %s43, 1
        %s198 = smul.addr %s197, 32
        %s199 = scalar_lea.vmem [#allocation2], %s198
        // Predicated region
        $region33: #{tpu_custom_call.1} parent=31 // pred_check
          %p200 = pneg %p56
        $region34: #{tpu_custom_call.1} parent=31 // pred_check_branch
          %202 = sbr.rel (%p200) target = $region36
        $region35: #{tpu_custom_call.1} parent=31 // pred_region
          %203 = dma.done %s196, 512
        $region36: #{tpu_custom_call.1} parent=31 // pred_fallthru
          _
        // Predicated region
        $region37: #{tpu_custom_call.1} parent=31 // pred_check
          %p204 = pneg %p77
        $region38: #{tpu_custom_call.1} parent=31 // pred_check_branch
          %206 = sbr.rel (%p204) target = $region40
        $region39: #{tpu_custom_call.1} parent=31 // pred_region
          %207 = dma.done [#allocation6], 64
        $region40: #{tpu_custom_call.1} parent=31 // pred_fallthru
          _
        // Predicated region
        $region41: #{tpu_custom_call.1} parent=31 // pred_check
          %p208 = pneg %p98
        $region42: #{tpu_custom_call.1} parent=31 // pred_check_branch
          %210 = sbr.rel (%p208) target = $region44
        $region43: #{tpu_custom_call.1} parent=31 // pred_region
          %211 = dma.done [#allocation6], 64
        $region44: #{tpu_custom_call.1} parent=31 // pred_fallthru
          _
        %s212 = sand.u32 %s43, 1
        %s213 = scalar_lea.sflag [#allocation3], %s212
        %s214 = sand.u32 %s43, 1
        %s215 = smul.addr %s214, 32
        %s216 = scalar_lea.vmem [#allocation2], %s215
        %p217 = pneg %p56
        %p218 = pneg %p53
        %p219 = pneg %p77
        %p220 = pneg %p74
        %p221 = pneg %p98
        %p222 = pneg %p95
        %p223 = pneg %p126
        %p224 = pneg %p123
        %s225 = sand.u32 %s113, 1
        %s226 = scalar_lea.sflag [#allocation4], %s225
        %s227 = sand.u32 %s113, 1
        %s228 = smul.addr %s227, 32
        %s229 = scalar_lea.vmem [#allocation8], %s228
        %s230 = smul.u32 8, %s26
        %s231 = smul.u32 8, %s26
        %v232 = vld [vmem:[%s199] sm:$0xff]
        %v233 = vld [vmem:[%s199 + $0x8] sm:$0xff]
        %v234 = vld [vmem:[%s199 + $0x10] sm:$0xff]
        %v235 = vld [vmem:[%s199 + $0x18] sm:$0xff]
        %v236 = vld [vmem:[#allocation5] sm:$0xf]
        %v237 = vld [vmem:[#allocation7] sm:$0xf]
        %239 = vset.pattern.permute.xlu0 0
        %240 = vperm.xlu0 %239, %v237
        %v241 = vpop.permute.xlu0 %240
        %v247 = vcombine.high %v232, %v232
        %v248 = vcombine.high %v233, %v233
        %v249 = vcombine.high %v234, %v234
        %v250 = vcombine.high %v235, %v235
        %vm251 = vcmask 31744
        %v253 = vsel %vm251, %v236, 0
        %vm255 = vcmask 1043456
        %v256 = vsel %vm255, %v232, 0
        %v258 = vsel %vm255, %v247, 0
        %v260 = vsel %vm255, %v233, 0
        %v262 = vsel %vm255, %v248, 0
        %v264 = vsel %vm255, %v234, 0
        %v266 = vsel %vm255, %v249, 0
        %v268 = vsel %vm255, %v235, 0
        %v270 = vsel %vm255, %v250, 0
        %272 = vmatprep.subr.mxu0 %v258
        %273 = vmatpush1.msra.mxu0 %v256
        %274 = vmatprep.subr.mxu0 0.0
        %275 = vmatpush1.msra.mxu0 0.0
        %276 = vmatprep.subr.mxu0 0.0
        %277 = vmatpush1.msra.mxu0 0.0
        %278 = vmatprep.subr.mxu0 0.0
        %279 = vmatpush1.msra.mxu0 0.0
        %280 = vmatprep.subr.mxu0 0.0
        %281 = vmatpush1.msra.mxu0 0.0
        %282 = vmatprep.subr.mxu0 0.0
        %283 = vmatpush1.msra.mxu0 0.0
        %284 = vmatprep.subr.mxu0 0.0
        %285 = vmatpush1.msra.mxu0 0.0
        %286 = vmatprep.subr.mxu0 0.0
        %287 = vmatpush1.msra.mxu0 0.0
        %288 = vmatprep.subr.mxu0 0.0
        %289 = vmatpush1.msra.mxu0 0.0
        %290 = vmatprep.subr.mxu0 0.0
        %291 = vmatpush1.msra.mxu0 0.0
        %292 = vmatprep.subr.mxu0 0.0
        %293 = vmatpush1.msra.mxu0 0.0
        %294 = vmatprep.subr.mxu0 0.0
        %295 = vmatpush1.msra.mxu0 0.0
        %296 = vmatprep.subr.mxu0 0.0
        %297 = vmatpush1.msra.mxu0 0.0
        %298 = vmatprep.subr.mxu0 0.0
        %299 = vmatpush1.msra.mxu0 0.0
        %300 = vmatprep.subr.mxu0 0.0
        %301 = vmatpush1.msra.mxu0 0.0
        %302 = vmatprep.subr.mxu0 0.0
        %303 = vmatpush1.msra.mxu0 0.0
        %304 = vmatprep.subr.mxu0 0.0
        %305 = vmatpush1.msra.mxu0 0.0
        %306 = vmatprep.subr.mxu0 0.0
        %307 = vmatpush1.msra.mxu0 0.0
        %308 = vmatprep.subr.mxu0 0.0
        %309 = vmatpush1.msra.mxu0 0.0
        %310 = vmatprep.subr.mxu0 0.0
        %311 = vmatpush1.msra.mxu0 0.0
        %312 = vmatprep.subr.mxu0 0.0
        %313 = vmatpush1.msra.mxu0 0.0
        %314 = vmatprep.subr.mxu0 0.0
        %315 = vmatpush1.msra.mxu0 0.0
        %316 = vmatprep.subr.mxu0 0.0
        %317 = vmatpush1.msra.mxu0 0.0
        %318 = vmatprep.subr.mxu0 0.0
        %319 = vmatpush1.msra.mxu0 0.0
        %320 = vmatprep.subr.mxu0 0.0
        %321 = vmatpush1.msra.mxu0 0.0
        %322 = vmatprep.subr.mxu0 0.0
        %323 = vmatpush1.msra.mxu0 0.0
        %324 = vmatprep.subr.mxu0 0.0
        %325 = vmatpush1.msra.mxu0 0.0
        %326 = vmatprep.subr.mxu0 0.0
        %327 = vmatpush1.msra.mxu0 0.0
        %328 = vmatprep.subr.mxu0 0.0
        %329 = vmatpush1.msra.mxu0 0.0
        %330 = vmatprep.subr.mxu0 0.0
        %331 = vmatpush1.msra.mxu0 0.0
        %332 = vmatprep.subr.mxu0 0.0
        %333 = vmatpush1.msra.mxu0 0.0
        %334 = vmatprep.subr.mxu0 0.0
        %335 = vmatpush1.msra.mxu0 0.0
        %336 = vmatprep.mubr.f32.mxu0 0.0
        %337 = vmatmul.mubr.f32.gmra.mrb[0].mxu0 %v253
        %v338 = vpop.f32.mrb[0].mxu0
        %v339 = vadd.f32 %v241, %v338
        %v340 = vpop.f32.mrb[0].mxu0
        %v341 = vadd.f32 %v241, %v340
        %342 = vdwg.mxu0
        %343 = vmatprep.subr.mxu0 %v262
        %344 = vmatpush1.msra.mxu0 %v260
        %345 = vmatprep.subr.mxu0 0.0
        %346 = vmatpush1.msra.mxu0 0.0
        %347 = vmatprep.subr.mxu0 0.0
        %348 = vmatpush1.msra.mxu0 0.0
        %349 = vmatprep.subr.mxu0 0.0
        %350 = vmatpush1.msra.mxu0 0.0
        %351 = vmatprep.subr.mxu0 0.0
        %352 = vmatpush1.msra.mxu0 0.0
        %353 = vmatprep.subr.mxu0 0.0
        %354 = vmatpush1.msra.mxu0 0.0
        %355 = vmatprep.subr.mxu0 0.0
        %356 = vmatpush1.msra.mxu0 0.0
        %357 = vmatprep.subr.mxu0 0.0
        %358 = vmatpush1.msra.mxu0 0.0
        %359 = vmatprep.subr.mxu0 0.0
        %360 = vmatpush1.msra.mxu0 0.0
        %361 = vmatprep.subr.mxu0 0.0
        %362 = vmatpush1.msra.mxu0 0.0
        %363 = vmatprep.subr.mxu0 0.0
        %364 = vmatpush1.msra.mxu0 0.0
        %365 = vmatprep.subr.mxu0 0.0
        %366 = vmatpush1.msra.mxu0 0.0
        %367 = vmatprep.subr.mxu0 0.0
        %368 = vmatpush1.msra.mxu0 0.0
        %369 = vmatprep.subr.mxu0 0.0
        %370 = vmatpush1.msra.mxu0 0.0
        %371 = vmatprep.subr.mxu0 0.0
        %372 = vmatpush1.msra.mxu0 0.0
        %373 = vmatprep.subr.mxu0 0.0
        %374 = vmatpush1.msra.mxu0 0.0
        %375 = vmatprep.subr.mxu0 0.0
        %376 = vmatpush1.msra.mxu0 0.0
        %377 = vmatprep.subr.mxu0 0.0
        %378 = vmatpush1.msra.mxu0 0.0
        %379 = vmatprep.subr.mxu0 0.0
        %380 = vmatpush1.msra.mxu0 0.0
        %381 = vmatprep.subr.mxu0 0.0
        %382 = vmatpush1.msra.mxu0 0.0
        %383 = vmatprep.subr.mxu0 0.0
        %384 = vmatpush1.msra.mxu0 0.0
        %385 = vmatprep.subr.mxu0 0.0
        %386 = vmatpush1.msra.mxu0 0.0
        %387 = vmatprep.subr.mxu0 0.0
        %388 = vmatpush1.msra.mxu0 0.0
        %389 = vmatprep.subr.mxu0 0.0
        %390 = vmatpush1.msra.mxu0 0.0
        %391 = vmatprep.subr.mxu0 0.0
        %392 = vmatpush1.msra.mxu0 0.0
        %393 = vmatprep.subr.mxu0 0.0
        %394 = vmatpush1.msra.mxu0 0.0
        %395 = vmatprep.subr.mxu0 0.0
        %396 = vmatpush1.msra.mxu0 0.0
        %397 = vmatprep.subr.mxu0 0.0
        %398 = vmatpush1.msra.mxu0 0.0
        %399 = vmatprep.subr.mxu0 0.0
        %400 = vmatpush1.msra.mxu0 0.0
        %401 = vmatprep.subr.mxu0 0.0
        %402 = vmatpush1.msra.mxu0 0.0
        %403 = vmatprep.subr.mxu0 0.0
        %404 = vmatpush1.msra.mxu0 0.0
        %405 = vmatprep.subr.mxu0 0.0
        %406 = vmatpush1.msra.mxu0 0.0
        %407 = vmatprep.mubr.f32.mxu0 0.0
        %408 = vmatmul.mubr.f32.gmra.mrb[0].mxu0 %v253
        %v409 = vpop.f32.mrb[0].mxu0
        %v410 = vadd.f32 %v241, %v409
        %v411 = vpop.f32.mrb[0].mxu0
        %v412 = vadd.f32 %v241, %v411
        %413 = vdwg.mxu0
        %414 = vmatprep.subr.mxu0 %v266
        %415 = vmatpush1.msra.mxu0 %v264
        %416 = vmatprep.subr.mxu0 0.0
        %417 = vmatpush1.msra.mxu0 0.0
        %418 = vmatprep.subr.mxu0 0.0
        %419 = vmatpush1.msra.mxu0 0.0
        %420 = vmatprep.subr.mxu0 0.0
        %421 = vmatpush1.msra.mxu0 0.0
        %422 = vmatprep.subr.mxu0 0.0
        %423 = vmatpush1.msra.mxu0 0.0
        %424 = vmatprep.subr.mxu0 0.0
        %425 = vmatpush1.msra.mxu0 0.0
        %426 = vmatprep.subr.mxu0 0.0
        %427 = vmatpush1.msra.mxu0 0.0
        %428 = vmatprep.subr.mxu0 0.0
        %429 = vmatpush1.msra.mxu0 0.0
        %430 = vmatprep.subr.mxu0 0.0
        %431 = vmatpush1.msra.mxu0 0.0
        %432 = vmatprep.subr.mxu0 0.0
        %433 = vmatpush1.msra.mxu0 0.0
        %434 = vmatprep.subr.mxu0 0.0
        %435 = vmatpush1.msra.mxu0 0.0
        %436 = vmatprep.subr.mxu0 0.0
        %437 = vmatpush1.msra.mxu0 0.0
        %438 = vmatprep.subr.mxu0 0.0
        %439 = vmatpush1.msra.mxu0 0.0
        %440 = vmatprep.subr.mxu0 0.0
        %441 = vmatpush1.msra.mxu0 0.0
        %442 = vmatprep.subr.mxu0 0.0
        %443 = vmatpush1.msra.mxu0 0.0
        %444 = vmatprep.subr.mxu0 0.0
        %445 = vmatpush1.msra.mxu0 0.0
        %446 = vmatprep.subr.mxu0 0.0
        %447 = vmatpush1.msra.mxu0 0.0
        %448 = vmatprep.subr.mxu0 0.0
        %449 = vmatpush1.msra.mxu0 0.0
        %450 = vmatprep.subr.mxu0 0.0
        %451 = vmatpush1.msra.mxu0 0.0
        %452 = vmatprep.subr.mxu0 0.0
        %453 = vmatpush1.msra.mxu0 0.0
        %454 = vmatprep.subr.mxu0 0.0
        %455 = vmatpush1.msra.mxu0 0.0
        %456 = vmatprep.subr.mxu0 0.0
        %457 = vmatpush1.msra.mxu0 0.0
        %458 = vmatprep.subr.mxu0 0.0
        %459 = vmatpush1.msra.mxu0 0.0
        %460 = vmatprep.subr.mxu0 0.0
        %461 = vmatpush1.msra.mxu0 0.0
        %462 = vmatprep.subr.mxu0 0.0
        %463 = vmatpush1.msra.mxu0 0.0
        %464 = vmatprep.subr.mxu0 0.0
        %465 = vmatpush1.msra.mxu0 0.0
        %466 = vmatprep.subr.mxu0 0.0
        %467 = vmatpush1.msra.mxu0 0.0
        %468 = vmatprep.subr.mxu0 0.0
        %469 = vmatpush1.msra.mxu0 0.0
        %470 = vmatprep.subr.mxu0 0.0
        %471 = vmatpush1.msra.mxu0 0.0
        %472 = vmatprep.subr.mxu0 0.0
        %473 = vmatpush1.msra.mxu0 0.0
        %474 = vmatprep.subr.mxu0 0.0
        %475 = vmatpush1.msra.mxu0 0.0
        %476 = vmatprep.subr.mxu0 0.0
        %477 = vmatpush1.msra.mxu0 0.0
        %478 = vmatprep.mubr.f32.mxu0 0.0
        %479 = vmatmul.mubr.f32.gmra.mrb[0].mxu0 %v253
        %v480 = vpop.f32.mrb[0].mxu0
        %v481 = vadd.f32 %v241, %v480
        %v482 = vpop.f32.mrb[0].mxu0
        %v483 = vadd.f32 %v241, %v482
        %484 = vdwg.mxu0
        %485 = vmatprep.subr.mxu0 %v270
        %486 = vmatpush1.msra.mxu0 %v268
        %487 = vmatprep.subr.mxu0 0.0
        %488 = vmatpush1.msra.mxu0 0.0
        %489 = vmatprep.subr.mxu0 0.0
        %490 = vmatpush1.msra.mxu0 0.0
        %491 = vmatprep.subr.mxu0 0.0
        %492 = vmatpush1.msra.mxu0 0.0
        %493 = vmatprep.subr.mxu0 0.0
        %494 = vmatpush1.msra.mxu0 0.0
        %495 = vmatprep.subr.mxu0 0.0
        %496 = vmatpush1.msra.mxu0 0.0
        %497 = vmatprep.subr.mxu0 0.0
        %498 = vmatpush1.msra.mxu0 0.0
        %499 = vmatprep.subr.mxu0 0.0
        %500 = vmatpush1.msra.mxu0 0.0
        %501 = vmatprep.subr.mxu0 0.0
        %502 = vmatpush1.msra.mxu0 0.0
        %503 = vmatprep.subr.mxu0 0.0
        %504 = vmatpush1.msra.mxu0 0.0
        %505 = vmatprep.subr.mxu0 0.0
        %506 = vmatpush1.msra.mxu0 0.0
        %507 = vmatprep.subr.mxu0 0.0
        %508 = vmatpush1.msra.mxu0 0.0
        %509 = vmatprep.subr.mxu0 0.0
        %510 = vmatpush1.msra.mxu0 0.0
        %511 = vmatprep.subr.mxu0 0.0
        %512 = vmatpush1.msra.mxu0 0.0
        %513 = vmatprep.subr.mxu0 0.0
        %514 = vmatpush1.msra.mxu0 0.0
        %515 = vmatprep.subr.mxu0 0.0
        %516 = vmatpush1.msra.mxu0 0.0
        %517 = vmatprep.subr.mxu0 0.0
        %518 = vmatpush1.msra.mxu0 0.0
        %519 = vmatprep.subr.mxu0 0.0
        %520 = vmatpush1.msra.mxu0 0.0
        %521 = vmatprep.subr.mxu0 0.0
        %522 = vmatpush1.msra.mxu0 0.0
        %523 = vmatprep.subr.mxu0 0.0
        %524 = vmatpush1.msra.mxu0 0.0
        %525 = vmatprep.subr.mxu0 0.0
        %526 = vmatpush1.msra.mxu0 0.0
        %527 = vmatprep.subr.mxu0 0.0
        %528 = vmatpush1.msra.mxu0 0.0
        %529 = vmatprep.subr.mxu0 0.0
        %530 = vmatpush1.msra.mxu0 0.0
        %531 = vmatprep.subr.mxu0 0.0
        %532 = vmatpush1.msra.mxu0 0.0
        %533 = vmatprep.subr.mxu0 0.0
        %534 = vmatpush1.msra.mxu0 0.0
        %535 = vmatprep.subr.mxu0 0.0
        %536 = vmatpush1.msra.mxu0 0.0
        %537 = vmatprep.subr.mxu0 0.0
        %538 = vmatpush1.msra.mxu0 0.0
        %539 = vmatprep.subr.mxu0 0.0
        %540 = vmatpush1.msra.mxu0 0.0
        %541 = vmatprep.subr.mxu0 0.0
        %542 = vmatpush1.msra.mxu0 0.0
        %543 = vmatprep.subr.mxu0 0.0
        %544 = vmatpush1.msra.mxu0 0.0
        %545 = vmatprep.subr.mxu0 0.0
        %546 = vmatpush1.msra.mxu0 0.0
        %547 = vmatprep.subr.mxu0 0.0
        %548 = vmatpush1.msra.mxu0 0.0
        %549 = vmatprep.mubr.f32.mxu0 0.0
        %550 = vmatmul.mubr.f32.gmra.mrb[0].mxu0 %v253
        %v551 = vpop.f32.mrb[0].mxu0
        %v552 = vadd.f32 %v241, %v551
        %v553 = vpop.f32.mrb[0].mxu0
        %v554 = vadd.f32 %v241, %v553
        %555 = vdwg.mxu0
        %v564 = vcombine.low %v339, %v341
        %v565 = vcombine.low %v410, %v412
        %v566 = vcombine.low %v481, %v483
        %v567 = vcombine.low %v552, %v554
        %572 = vst [vmem:[%s229] sm:$0xff] %v564
        %573 = vst [vmem:[%s229 + $0x8] sm:$0xff] %v565
        %574 = vst [vmem:[%s229 + $0x10] sm:$0xff] %v566
        %575 = vst [vmem:[%s229 + $0x18] sm:$0xff] %v567
        %s576 = sand.u32 %s113, 1
        %s577 = scalar_lea.sflag [#allocation4], %s576
        %s578 = sand.u32 %s113, 1
        %s579 = smul.addr %s578, 32
        %s580 = scalar_lea.vmem [#allocation8], %s579
        // Predicated region
        $region45: #{tpu_custom_call.1} parent=31 // pred_check
          %p581 = pneg %p123
        $region46: #{tpu_custom_call.1} parent=31 // pred_check_branch
          %583 = sbr.rel (%p581) target = $region48
        $region47: #{tpu_custom_call.1} parent=31 // pred_region
          %s584 = smul.u32 8, %s26
          %s586 = ssub.s32 512, 512
          %587 = vsyncadd %s577, %s586
          %s588 = smul.addr %s25, 8
          %s589 = sadd.s32 %s584, %s588
          %s590 = smul.addr %s589, 64
          %s591 = scalar_lea.hbm %s3, %s590
          %s593 = sshll.u32 %s580, 4
          %s594 = int_to_ptr.vmem [resolvable:$true] %s593
          %596 = dma.vmem_to_hbm [thread:$0]  %s594, 512, %s591, %s577
        $region48: #{tpu_custom_call.1} parent=31 // pred_fallthru
          _
      $region32: #{tpu_custom_call.1} parent=5 // pred_fallthru
        _
      %p597 = scmp.le.s32.totalorder 2, %s16
      // Predicated region
      $region49: #{tpu_custom_call.1} parent=5 // pred_check
        %p598 = pneg %p597
      $region50: #{tpu_custom_call.1} parent=5 // pred_check_branch
        %600 = sbr.rel (%p598) target = $region52
      $region51: #{tpu_custom_call.1} parent=5 // pred_region
        %s601 = ssub.s32 %s16, 2
        // Predicated region
        $region53: #{tpu_custom_call.1} parent=51 // pred_check
          %p602 = pneg %p129
        $region54: #{tpu_custom_call.1} parent=51 // pred_check_branch
          %604 = sbr.rel (%p602) target = $region56
        $region55: #{tpu_custom_call.1} parent=51 // pred_region
          %s605 = sand.u32 %s114, 1
          %s606 = scalar_lea.sflag [#allocation4], %s605
          %s607 = sand.u32 %s114, 1
          %s608 = smul.addr %s607, 32
          %s609 = scalar_lea.vmem [#allocation8], %s608
          %610 = dma.done %s606, 512
        $region56: #{tpu_custom_call.1} parent=51 // pred_fallthru
          _
      $region52: #{tpu_custom_call.1} parent=5 // pred_fallthru
        _
    $region6: #{tpu_custom_call.1} parent=1 // loop_footer
      %s20 = sadd.s32 1, %s16
    $region7: #{tpu_custom_call.1} parent=1 // loop_footer_branch
      %15 = sbr.rel target = $region3
    $region8: #{tpu_custom_call.1} parent=1 // loop_exit
      _
    %611 = vsyncpa [#allocation3], 1
    %s612 = scalar_lea.sflag [#allocation3], 1
    %613 = vsyncpa %s612, 1
    %614 = vsyncpa [#allocation6], 1
    %615 = vsyncpa [#allocation4], 1
    %s616 = scalar_lea.sflag [#allocation4], 1
    %617 = vsyncpa %s616, 1

</llo_original>
